<compile_context>
chip_gen: v7x
topology: tpu7x:2x2x1
jax: 0.10.0
libtpu: 0.0.40
codegen_flags: <defaults>
</compile_context>

<pallas_src>
import jax
import jax.numpy as jnp
from jax.experimental import pallas as pl
from jax.experimental.pallas import tpu as pltpu

_LANE = 128


def build_encoding_t(d_model: int, max_len: int) -> jnp.ndarray:
    """PE table built directly in layout-final (d_model, max_len) form.

    Matches PositionalEncoding.__init__ (which builds (max_len, d_model)),
    just pre-transposed so the forward pass never transposes.
    """
    pos = jnp.arange(0, max_len, dtype=jnp.float32)[None, :]             # (1, max_len)
    _2i = jnp.arange(0, d_model, 2, dtype=jnp.float32)[:, None]          # (d_model/2, 1)
    angle = pos / (10000.0 ** (_2i / d_model))                           # (d_model/2, max_len)
    enc_t = jnp.zeros((d_model, max_len), dtype=jnp.float32)
    enc_t = enc_t.at[0::2, :].set(jnp.sin(angle))
    enc_t = enc_t.at[1::2, :].set(jnp.cos(angle))
    return enc_t


def make_pe_row(encoding_t: jnp.ndarray, seq_len: int, dtype) -> jnp.ndarray:
    """Flattened (1, d_model*seq_len) PE row in the same d-major/s-minor layout
    as the flattened x rows. Compute once per (seq_len, dtype) and reuse."""
    d_model, max_len = encoding_t.shape
    if seq_len > max_len:
        raise ValueError(f"seq_len={seq_len} exceeds max_len={max_len}")
    return encoding_t[:, :seq_len].reshape(1, d_model * seq_len).astype(dtype)


def _pe_add_kernel(x_ref, pe_ref, o_ref):
    # x_ref/o_ref: (row_tile, n_tile) lane-dense slabs; pe_ref: (1, n_tile).
    # Single sublane-broadcast add per grid step — pure VPU work.
    o_ref[...] = x_ref[...] + pe_ref[...]


def _choose_tiles(B: int, N: int, itemsize: int, budget_bytes: int):
    """Pick (row_tile, n_tile) for the (B, N) slab.

    ~budget_bytes per buffer keeps double-buffered x + out tiles (+ pe) under
    the scoped-VMEM defaults of every generation (v5e 16 MiB, v6e/v7x 32 MiB).
    """
    sub = max(1, 32 // itemsize)                    # 8 (f32) / 16 (bf16) / 32 (i8)

    # Lane-axis tile: multiple of 128, >=512 lanes when N allows, bounded by
    # the budget for a sub-sublane-deep slab. Non-128-multiple N -> full N
    # (always a legal block last dim).
    if N % _LANE != 0 or N <= 4 * _LANE:
        n_tile = N
    else:
        lanes_fit = max(_LANE, (budget_bytes // (sub * itemsize)) // _LANE * _LANE)
        n_tile = min(N, max(4 * _LANE, lanes_fit))

    # Row tile: sublane-aligned, sized so row_tile * n_tile fits the budget.
    rows_fit = max(sub, (budget_bytes // (n_tile * itemsize)) // sub * sub)
    row_tile = B if B <= rows_fit else rows_fit

    # Megacore: on large-enough inputs guarantee >=2 grid steps so the
    # "parallel" axes can shard across v7x's two TensorCores.
    total_bytes = B * N * itemsize
    if total_bytes >= (1 << 20) and row_tile == B and n_tile == N:
        if B >= 2 * sub:
            row_tile = pl.cdiv(pl.cdiv(B, 2), sub) * sub
        elif N % (2 * _LANE) == 0 and N >= 8 * _LANE:
            n_tile = N // 2

    return row_tile, n_tile


def positional_encoding_forward(
    x: jnp.ndarray,
    encoding_t: jnp.ndarray,
    *,
    pe_row: jnp.ndarray | None = None,
    donate_x: bool = False,
    min_pallas_bytes: int = 256 * 1024,
    vmem_budget_bytes: int = 3 << 20,
) -> jnp.ndarray:
    """x: (B, D, S); encoding_t: (D, max_len). Returns x + PE (same shape/dtype).

    pe_row: optional precomputed make_pe_row(encoding_t, S, x.dtype) (cache it
            across calls to skip the per-call slice/reshape/cast).
    donate_x: set True only if the caller donates x at the jit boundary; then
            the output aliases x (in-place add, no extra HBM pass).
    """
    B, D, S = x.shape
    N = D * S
    itemsize = x.dtype.itemsize

    if pe_row is None:
        pe_row = make_pe_row(encoding_t, S, x.dtype)                     # (1, N)

    # Small-input fast path: fixed pallas_call overhead dominates; let XLA fuse.
    if B * N * itemsize < min_pallas_bytes:
        return (x.reshape(B, N) + pe_row).reshape(B, D, S)

    # TODO(synk): verify in xprof that these reshapes lower to bitcasts (not
    # relayout copies) for S < 128; if they materialize, keep 3-D blocking with
    # block last-dims equal to the full (D, S) instead of flattening.
    x2 = x.reshape(B, N)                                                 # (B, N)

    row_tile, n_tile = _choose_tiles(B, N, itemsize, vmem_budget_bytes)
    grid = (pl.cdiv(B, row_tile), pl.cdiv(N, n_tile))

    alias_kwargs = {"input_output_aliases": {0: 0}} if donate_x else {}

    out2 = pl.pallas_call(
        _pe_add_kernel,
        out_shape=jax.ShapeDtypeStruct((B, N), x.dtype),
        grid_spec=pltpu.PrefetchScalarGridSpec(
            num_scalar_prefetch=0,
            grid=grid,
            in_specs=[
                pl.BlockSpec((row_tile, n_tile), lambda r, j: (r, j)),   # x tile
                pl.BlockSpec((1, n_tile), lambda r, j: (0, j)),          # pe row tile
            ],
            out_specs=pl.BlockSpec((row_tile, n_tile), lambda r, j: (r, j)),
        ),
        compiler_params=pltpu.CompilerParams(
            # Both axes are independent -> shardable across the 2 TCs on v7x.
            dimension_semantics=("parallel", "parallel"),
        ),
        **alias_kwargs,
    )(x2, pe_row)

    return out2.reshape(B, D, S)


if __name__ == "__main__":
    # Small shapes consistent with the module: d_model=32 features, seq_len=16.
    batch = 2
    d_model = 32
    seq_len = 16
    max_len = 64

    key = jax.random.PRNGKey(0)
    x = jax.random.normal(key, (batch, d_model, seq_len), dtype=jnp.float32)

    encoding_t = build_encoding_t(d_model, max_len)                      # (D, max_len)
    pe_row = make_pe_row(encoding_t, seq_len, x.dtype)                   # cached per (S, dtype)

    # Reference computed exactly as the PyTorch module does it:
    # build (max_len, d_model), slice to seq_len, transpose, broadcast-add.
    pos = jnp.arange(0, max_len, dtype=jnp.float32)[:, None]
    _2i = jnp.arange(0, d_model, 2, dtype=jnp.float32)
    ang = pos / (10000.0 ** (_2i / d_model))
    enc = jnp.zeros((max_len, d_model), dtype=jnp.float32)
    enc = enc.at[:, 0::2].set(jnp.sin(ang))
    enc = enc.at[:, 1::2].set(jnp.cos(ang))
    pe_ds = jnp.transpose(enc[:seq_len, :], (1, 0))[None, :, :]          # (1, D, S)

    # 1) Pallas path (forced even at this tiny size so the kernel runs).
    ref = x + pe_ds
    out = positional_encoding_forward(x, encoding_t, pe_row=pe_row, min_pallas_bytes=0)
    out = jax.block_until_ready(out)
    assert out.shape == (batch, d_model, seq_len)
    assert jnp.allclose(out, ref, atol=1e-6), "mismatch vs reference (pallas path)"

    # 2) Pallas path with an awkward batch and a tiny forced VMEM budget:
    #    exercises the cdiv grid + ragged (masked) last row block.
    b2 = 10
    x_b = jax.random.normal(jax.random.PRNGKey(1), (b2, d_model, seq_len), dtype=jnp.float32)
    ref_b = x_b + pe_ds
    out_b = positional_encoding_forward(
        x_b, encoding_t, pe_row=pe_row, min_pallas_bytes=0,
        vmem_budget_bytes=8 * 128 * 4)
    out_b = jax.block_until_ready(out_b)
    assert jnp.allclose(out_b, ref_b, atol=1e-6), "mismatch vs reference (tiled/ragged path)"

    # 3) Small-input fast path (plain JAX broadcast add).
    out_fast = jax.block_until_ready(
        positional_encoding_forward(x, encoding_t, pe_row=pe_row))
    assert jnp.allclose(out_fast, ref, atol=1e-6), "mismatch vs reference (fast path)"

    print("KERNEL_OK")
</pallas_src>

<mosaic_0001>
module attributes {stable_mosaic.version = 11 : i64} {
  func.func @_pe_add_kernel(%arg0: i32, %arg1: i32, %arg2: memref<2x512xf32, #tpu.memory_space<vmem>>, %arg3: memref<1x512xf32, #tpu.memory_space<vmem>>, %arg4: memref<2x512xf32, #tpu.memory_space<vmem>>) attributes {dimension_semantics = [#tpu.dimension_semantics<parallel>, #tpu.dimension_semantics<parallel>], iteration_bounds = array<i64: 1, 1>, scalar_prefetch = 0 : i64, scratch_operands = 0 : i64, tpu.core_type = #tpu.core_type<tc>, window_params = [{transform_indices = @transform_0, window_bounds = array<i64: 2, 512>}, {transform_indices = @transform_1, window_bounds = array<i64: 1, 512>}, {transform_indices = @transform_2, window_bounds = array<i64: 2, 512>}]} {
    %c0 = arith.constant 0 : index
    %c0_0 = arith.constant 0 : index
    %0 = vector.load %arg2[%c0, %c0_0] : memref<2x512xf32, #tpu.memory_space<vmem>>, vector<2x512xf32>
    %c0_1 = arith.constant 0 : index
    %c0_2 = arith.constant 0 : index
    %1 = vector.load %arg3[%c0_1, %c0_2] : memref<1x512xf32, #tpu.memory_space<vmem>>, vector<1x512xf32>
    %2 = vector.broadcast %1 : vector<1x512xf32> to vector<2x512xf32>
    %3 = arith.addf %0, %2 : vector<2x512xf32>
    %c0_3 = arith.constant 0 : index
    %c0_4 = arith.constant 0 : index
    %4 = vector.load %arg4[%c0_3, %c0_4] : memref<2x512xf32, #tpu.memory_space<vmem>>, vector<2x512xf32>
    tpu.vector_store %arg4[%c0_3, %c0_4], %3 {strides = array<i32>} : memref<2x512xf32, #tpu.memory_space<vmem>>, vector<2x512xf32>,
    return
  }
  func.func @transform_0(%arg0: i32, %arg1: i32) -> (i32, i32) {
    %c0_i32 = arith.constant 0 : i32
    return %arg0, %arg1 : i32, i32
  }
  func.func @transform_1(%arg0: i32, %arg1: i32) -> (i32, i32) {
    %c0_i32 = arith.constant 0 : i32
    %c0_i32_0 = arith.constant 0 : i32
    return %c0_i32, %arg1 : i32, i32
  }
  func.func @transform_2(%arg0: i32, %arg1: i32) -> (i32, i32) {
    %c0_i32 = arith.constant 0 : i32
    return %arg0, %arg1 : i32, i32
  }
}

</mosaic_0001>

<llo_original>
// kernel: tpu_custom_call.1
$region0: #{tpu_custom_call.1}
  #allocation0 [shape = 'u32[]', space=smem, size = 0x4, offset = 0x4, fixed_abs, tag = 'smem constant byte address 0x4 - core index']
  #allocation1 [shape = 'u32[144,128]{1,0:T(1,128)}', space=vmem, size = 0x12000, scoped, tag = 'internal scratch']
  %s0 = inlined_call_operand.hbm [shape: f32[2,512], index: 0, kind: input, shape index: {}]
  %s1 = inlined_call_operand.hbm [shape: f32[1,512], index: 1, kind: input, shape index: {}]
  %s2 = inlined_call_operand.hbm [shape: f32[2,512], index: 2, kind: output, shape index: {}]
  %s3 = sld [smem:[#allocation0]]
  $region26: #{tpu_custom_call.1} parent=0
    _
  %s5 = ssub.s32 1, %s3
  %s6 = scalar_select 0, %s5, %s3
  $region1: #{tpu_custom_call.1} parent=0
    #allocation2 [shape = 'u8[4096]{0}', space=vmem, size = 0x1000, scoped, tag = 'input window, operand 0, single buffered']
    #allocation3 [shape = 's32[1]{0}', space=sflag, size = 0x4, scoped, tag = 'scoped memory for tpu_custom_call.1']
    #allocation4 [shape = 's32[1]{0}', space=sflag, size = 0x4, scoped, tag = 'scoped memory for tpu_custom_call.1']
    #allocation5 [shape = 'u8[2048]{0}', space=vmem, size = 0x800, scoped, tag = 'input window, operand 1, single buffered']
    #allocation6 [shape = 's32[1]{0}', space=sflag, size = 0x4, scoped, tag = 'scoped memory for tpu_custom_call.1']
    #allocation7 [shape = 'u8[4096]{0}', space=vmem, size = 0x1000, scoped, tag = 'output window, operand 0, single buffered']
    %7 = vsyncpa [#allocation3], 0
    %8 = vsyncpa [#allocation6], 0
    %9 = vsyncpa [#allocation4], 0
    // Predicated region
    $region2: #{tpu_custom_call.1} parent=1 // pred_check
      _
    $region3: #{tpu_custom_call.1} parent=1 // pred_check_branch
      %11 = sbr.rel (0) target = $region5
    $region4: #{tpu_custom_call.1} parent=1 // pred_region
      %s13 = ssub.s32 128, 128
      %14 = vsyncadd [#allocation3], %s13
      %s16 = sshll.u32 [#allocation2], 4
      %s17 = int_to_ptr.vmem [resolvable:$true] %s16
      %19 = dma.hbm_to_vmem [thread:$0]  %s0, 128, %s17, [#allocation3]
    $region5: #{tpu_custom_call.1} parent=1 // pred_fallthru
      _
    // Predicated region
    $region6: #{tpu_custom_call.1} parent=1 // pred_check
      _
    $region7: #{tpu_custom_call.1} parent=1 // pred_check_branch
      %21 = sbr.rel (0) target = $region9
    $region8: #{tpu_custom_call.1} parent=1 // pred_region
      %s23 = ssub.s32 64, 64
      %24 = vsyncadd [#allocation6], %s23
      %s26 = sshll.u32 [#allocation5], 4
      %s27 = int_to_ptr.vmem [resolvable:$true] %s26
      %29 = dma.hbm_to_vmem [thread:$0]  %s1, 64, %s27, [#allocation6]
    $region9: #{tpu_custom_call.1} parent=1 // pred_fallthru
      _
    // Predicated region
    $region10: #{tpu_custom_call.1} parent=1 // pred_check
      _
    $region11: #{tpu_custom_call.1} parent=1 // pred_check_branch
      %31 = sbr.rel (0) target = $region13
    $region12: #{tpu_custom_call.1} parent=1 // pred_region
      %32 = dma.done [#allocation3], 128
    $region13: #{tpu_custom_call.1} parent=1 // pred_fallthru
      _
    // Predicated region
    $region14: #{tpu_custom_call.1} parent=1 // pred_check
      _
    $region15: #{tpu_custom_call.1} parent=1 // pred_check_branch
      %34 = sbr.rel (0) target = $region17
    $region16: #{tpu_custom_call.1} parent=1 // pred_region
      %35 = dma.done [#allocation6], 64
    $region17: #{tpu_custom_call.1} parent=1 // pred_fallthru
      _
    %v36 = vld [vmem:[#allocation2] sm:$0xff]
    %v37 = vld [vmem:[#allocation5] sm:$0xf]
    %v39 = vlaneseq
    %v40 = vshrl.u32 %v39, 7
    %v41 = vsub.s32 0, %v40
    %v42 = vrot.slane %v37, %v41
    %v43 = vlaneseq
    %v44 = vshrl.u32 %v43, 7
    %v45 = vsub.s32 1, %v44
    %v46 = vrot.slane %v37, %v45
    %v47 = vlaneseq
    %v48 = vshrl.u32 %v47, 7
    %v49 = vsub.s32 2, %v48
    %v50 = vrot.slane %v37, %v49
    %v51 = vlaneseq
    %v52 = vshrl.u32 %v51, 7
    %v53 = vsub.s32 3, %v52
    %v54 = vrot.slane %v37, %v53
    %v55 = vcombine.low %v42, %v46
    %v56 = vcombine.low %v50, %v54
    %v58 = vunpack.c.l.s4 1983009808
    %v59 = vunpack.c.0.s8 %v58
    %v60 = vlaneseq
    %v61 = vshrl.u32 %v60, 7
    %v62 = vsub.s32 %v59, %v61
    %v63 = vrot.slane %v55, %v62
    %v65 = vunpack.c.l.s4 1983009808
    %v66 = vunpack.c.0.s8 %v65
    %v67 = vlaneseq
    %v68 = vshrl.u32 %v67, 7
    %v69 = vsub.s32 %v66, %v68
    %v70 = vrot.slane %v56, %v69
    %v71 = vcombine.low %v63, %v70
    %v73 = vadd.f32 %v36, %v71
    %74 = vst [vmem:[#allocation7] sm:$0xff] %v73
    // Predicated region
    $region18: #{tpu_custom_call.1} parent=1 // pred_check
      _
    $region19: #{tpu_custom_call.1} parent=1 // pred_check_branch
      %76 = sbr.rel (0) target = $region21
    $region20: #{tpu_custom_call.1} parent=1 // pred_region
      %s78 = ssub.s32 128, 128
      %79 = vsyncadd [#allocation4], %s78
      %s81 = sshll.u32 [#allocation7], 4
      %s82 = int_to_ptr.vmem [resolvable:$true] %s81
      %84 = dma.vmem_to_hbm [thread:$0]  %s82, 128, %s2, [#allocation4]
    $region21: #{tpu_custom_call.1} parent=1 // pred_fallthru
      _
    // Predicated region
    $region22: #{tpu_custom_call.1} parent=1 // pred_check
      _
    $region23: #{tpu_custom_call.1} parent=1 // pred_check_branch
      %86 = sbr.rel (0) target = $region25
    $region24: #{tpu_custom_call.1} parent=1 // pred_region
      %87 = dma.done [#allocation4], 128
    $region25: #{tpu_custom_call.1} parent=1 // pred_fallthru
      _
    %88 = vsyncpa [#allocation3], 1
    %89 = vsyncpa [#allocation6], 1
    %90 = vsyncpa [#allocation4], 1

</llo_original>
